<compile_context>
chip_gen: v7x
topology: tpu7x:2x2x1
jax: 0.10.0
libtpu: 0.0.40
codegen_flags: <defaults>
</compile_context>

<pallas_src>
import jax
import jax.numpy as jnp
import numpy as np
from jax import lax
from jax.experimental import pallas as pl
from jax.experimental.pallas import tpu as pltpu

EPS = 1e-5

# Size double-buffered streamed tiles to fit comfortably inside the smallest
# default scoped-VMEM across generations (v5e: 16 MiB scoped, v6e: 32 MiB,
# v7x: 32 MiB scoped / 64 MiB physical).  1024 rows is past the measured HBM
# roofline saturation point (~512 rows), so cap there.
_VMEM_STREAM_BUDGET = 12 * 1024 * 1024
_MAX_ROW_TILE = 1024


def _round_up(x, m):
    return ((x + m - 1) // m) * m


def _choose_row_tile(n_rows, stream_bytes_per_row):
    """Largest row tile (multiple of 8) whose streamed buffers fit the budget."""
    tn = _VMEM_STREAM_BUDGET // max(int(stream_bytes_per_row), 1)
    tn = max(8, min(tn, _MAX_ROW_TILE))
    tn = (tn // 8) * 8
    if n_rows <= tn:
        return _round_up(max(n_rows, 1), 8)
    return tn


def _pad_rows(a, rows):
    pad = rows - a.shape[0]
    if pad == 0:
        return a
    return jnp.pad(a, ((0, pad), (0, 0)))


def _packing(num_features):
    """Pack g = 128 // F consecutive rows into one 128-lane row when F < 128."""
    if num_features < 128 and 128 % num_features == 0:
        g = 128 // num_features
    else:
        g = 1
    return g, g * num_features


# ----------------------------------------------------------------------------
# Kernel 1: masked batch-norm statistics (reduction over the row axis).
#   acc row 0 -> sum_{masked rows} x      (per packed lane)
#   acc row 1 -> sum_{masked rows} x^2    (per packed lane)
#   acc row 2 -> count of masked rows (broadcast across lanes)
# Accumulates in VMEM scratch, writes the output block once at the last step.
# Grid = (num_partials, steps): leading axis is "parallel" (megacore on v7x).
# ----------------------------------------------------------------------------
def _bn_stats_kernel(x_ref, m_ref, e_ref, o_ref, acc_ref):
    step = pl.program_id(1)

    @pl.when(step == 0)
    def _init():
        acc_ref[...] = jnp.zeros_like(acc_ref)

    x = x_ref[...].astype(jnp.float32)            # (tn, L)
    m = (m_ref[...] > 0).astype(jnp.float32)      # (tn, G)
    if m_ref.shape[1] > 1:
        # expand per-row mask to per-lane mask on the (otherwise idle) MXU
        me = jnp.dot(m, e_ref[...], preferred_element_type=jnp.float32)  # (tn, L)
    else:
        me = m                                    # (tn, 1) broadcasts over lanes
    xm = x * me
    acc_ref[0:1, :] += jnp.sum(xm, axis=0, keepdims=True)
    acc_ref[1:2, :] += jnp.sum(xm * x, axis=0, keepdims=True)
    acc_ref[2:3, :] += jnp.sum(m)

    @pl.when(step == pl.num_programs(1) - 1)
    def _emit():
        o_ref[...] = acc_ref[...]


# ----------------------------------------------------------------------------
# Kernel 2: apply affine-normalization to masked rows, pass others through.
#   y = mask>0 ? x * scale + shift : x
# ----------------------------------------------------------------------------
def _bn_apply_kernel(x_ref, m_ref, e_ref, scale_ref, shift_ref, o_ref):
    x = x_ref[...].astype(jnp.float32)            # (tn, L)
    m = (m_ref[...] > 0).astype(jnp.float32)      # (tn, G)
    y = x * scale_ref[...] + shift_ref[...]
    if m_ref.shape[1] > 1:
        mm = jnp.dot(m, e_ref[...], preferred_element_type=jnp.float32) > 0.0
    else:
        mm = m > 0.0
    o_ref[...] = jnp.where(mm, y, x).astype(o_ref.dtype)


# ----------------------------------------------------------------------------
# Kernel 3: eval-mode affine normalization (no mask stream at all).
# ----------------------------------------------------------------------------
def _affine_kernel(x_ref, scale_ref, shift_ref, o_ref):
    x = x_ref[...].astype(jnp.float32)
    o_ref[...] = (x * scale_ref[...] + shift_ref[...]).astype(o_ref.dtype)


# ----------------------------------------------------------------------------
# Kernel 4: layer norm over the feature (last) dim.
# ----------------------------------------------------------------------------
def _layer_norm_kernel(x_ref, g_ref, b_ref, o_ref):
    x = x_ref[...].astype(jnp.float32)
    mean = jnp.mean(x, axis=-1, keepdims=True)
    xc = x - mean
    var = jnp.mean(xc * xc, axis=-1, keepdims=True)   # biased, like torch
    inv = lax.rsqrt(var + EPS)
    o_ref[...] = (xc * inv * g_ref[...] + b_ref[...]).astype(o_ref.dtype)


# ----------------------------------------------------------------------------
# Python wrappers around pallas_call
# ----------------------------------------------------------------------------
def _bn_pack(x2d, mask1d, tn, g):
    """Pad rows to a multiple of tn*g and pack g rows into one 128-lane row."""
    n, f = x2d.shape
    L = g * f
    rows = _round_up(-(-n // g), tn)
    n_pad = rows * g
    xp = _pad_rows(x2d, n_pad).reshape(rows, L)
    mp = _pad_rows(mask1d.reshape(-1, 1).astype(jnp.float32), n_pad).reshape(rows, g)
    return xp, mp, rows


def _bn_masked_stats(xp, mp, e_mat, tn):
    rows, L = xp.shape
    g = mp.shape[1]
    tiles = rows // tn
    ncores = 2 if (tiles >= 2 and tiles % 2 == 0) else 1   # megacore partials (v7x)
    steps = tiles // ncores
    out = pl.pallas_call(
        _bn_stats_kernel,
        out_shape=jax.ShapeDtypeStruct((ncores * 8, L), jnp.float32),
        grid=(ncores, steps),
        in_specs=[
            pl.BlockSpec((tn, L), lambda c, i: (c * steps + i, 0)),
            pl.BlockSpec((tn, g), lambda c, i: (c * steps + i, 0)),
            pl.BlockSpec((g, L), lambda c, i: (0, 0)),
        ],
        out_specs=pl.BlockSpec((8, L), lambda c, i: (c, 0)),
        scratch_shapes=[pltpu.VMEM((8, L), jnp.float32)],
        compiler_params=pltpu.CompilerParams(
            dimension_semantics=("parallel", "arbitrary")),
    )(xp, mp, e_mat)
    # combine per-core partial sums
    return out.reshape(ncores, 8, L).sum(axis=0)


def _bn_apply(xp, mp, e_mat, scale_l, shift_l, tn, out_dtype):
    rows, L = xp.shape
    g = mp.shape[1]
    return pl.pallas_call(
        _bn_apply_kernel,
        out_shape=jax.ShapeDtypeStruct((rows, L), out_dtype),
        grid=(rows // tn,),
        in_specs=[
            pl.BlockSpec((tn, L), lambda i: (i, 0)),
            pl.BlockSpec((tn, g), lambda i: (i, 0)),
            pl.BlockSpec((g, L), lambda i: (0, 0)),
            pl.BlockSpec((1, L), lambda i: (0, 0)),
            pl.BlockSpec((1, L), lambda i: (0, 0)),
        ],
        out_specs=pl.BlockSpec((tn, L), lambda i: (i, 0)),
        compiler_params=pltpu.CompilerParams(
            dimension_semantics=("parallel",)),
    )(xp, mp, e_mat, scale_l, shift_l)


def _affine(xp, scale_l, shift_l, tn, out_dtype):
    rows, L = xp.shape
    return pl.pallas_call(
        _affine_kernel,
        out_shape=jax.ShapeDtypeStruct((rows, L), out_dtype),
        grid=(rows // tn,),
        in_specs=[
            pl.BlockSpec((tn, L), lambda i: (i, 0)),
            pl.BlockSpec((1, L), lambda i: (0, 0)),
            pl.BlockSpec((1, L), lambda i: (0, 0)),
        ],
        out_specs=pl.BlockSpec((tn, L), lambda i: (i, 0)),
        compiler_params=pltpu.CompilerParams(
            dimension_semantics=("parallel",)),
    )(xp, scale_l, shift_l)


def _layer_norm(x2d, gamma, beta):
    n, f = x2d.shape
    itemsize = jnp.dtype(x2d.dtype).itemsize
    tn = _choose_row_tile(n, 2 * (2 * f * itemsize))   # x in + out, double-buffered
    rows = _round_up(n, tn)
    xp = _pad_rows(x2d, rows)
    out = pl.pallas_call(
        _layer_norm_kernel,
        out_shape=jax.ShapeDtypeStruct((rows, f), x2d.dtype),
        grid=(rows // tn,),
        in_specs=[
            pl.BlockSpec((tn, f), lambda i: (i, 0)),
            pl.BlockSpec((1, f), lambda i: (0, 0)),
            pl.BlockSpec((1, f), lambda i: (0, 0)),
        ],
        out_specs=pl.BlockSpec((tn, f), lambda i: (i, 0)),
        compiler_params=pltpu.CompilerParams(
            dimension_semantics=("parallel",)),
    )(xp, gamma, beta)
    return out[:n]


class MaskedNormPallas:
    """JAX/Pallas re-implementation of MaskedNorm's forward pass."""

    def __init__(self, norm_type, num_features, affine=True, training=True):
        if norm_type not in ("batch", "layer"):
            raise ValueError("Unsupported Normalization Layer")
        self.norm_type = norm_type
        self.num_features = num_features
        self.training = training
        f = num_features
        # PyTorch default init; affine=False is numerically identical to
        # gamma=1 / beta=0, so the same parameters cover both cases here.
        self.gamma = jnp.ones((1, f), jnp.float32)
        self.beta = jnp.zeros((1, f), jnp.float32)
        self.running_mean = jnp.zeros((1, f), jnp.float32)
        self.running_var = jnp.ones((1, f), jnp.float32)
        # TODO(synk): running-stat (momentum) updates of BatchNorm1d are a
        # training-time side effect and do not change this forward output.

    def __call__(self, x, mask):
        f = self.num_features
        b = x.shape[0]
        x2d = x.reshape(-1, f)                 # keep original dtype end-to-end
        n = x2d.shape[0]

        if self.norm_type == "layer":
            out = _layer_norm(x2d, self.gamma, self.beta)
            return out.reshape(x.shape)

        # ---- batch norm (lane-dense packed layout when F < 128) ----
        g, L = _packing(f)
        itemsize = jnp.dtype(x2d.dtype).itemsize
        stream_bytes = 2 * (2 * L * itemsize + g * 4)   # x + out (+ mask), 2 buffers
        tn = _choose_row_tile(-(-n // g), stream_bytes)

        # lane-expansion matrix E[j, l] = 1 iff lane l belongs to packed row j
        e_mat = (jnp.arange(L) // f == jnp.arange(g)[:, None]).astype(jnp.float32)

        if self.training:
            xp, mp, rows = _bn_pack(x2d, mask.reshape(-1), tn, g)
            stats = _bn_masked_stats(xp, mp, e_mat, tn)          # (8, L) f32
            s = stats[0].reshape(g, f).sum(axis=0)               # (F,)
            ss = stats[1].reshape(g, f).sum(axis=0)               # (F,)
            cnt = stats[2, 0]
            # TODO(synk): if no row is masked, cnt == 0 -> NaN stats (torch would
            # error on the empty selection); no explicit guard, matching torch.
            mean = s / cnt
            var = ss / cnt - mean * mean                          # biased var (torch BN)
            scale = self.gamma * lax.rsqrt(var + EPS)             # (1, F)
            shift = self.beta - mean * scale
            scale_l = jnp.tile(scale, (1, g))
            shift_l = jnp.tile(shift, (1, g))
            out_p = _bn_apply(xp, mp, e_mat, scale_l, shift_l, tn, x2d.dtype)
        else:
            scale = self.gamma * lax.rsqrt(self.running_var + EPS)
            shift = self.beta - self.running_mean * scale
            scale_l = jnp.tile(scale, (1, g))
            shift_l = jnp.tile(shift, (1, g))
            rows = _round_up(-(-n // g), tn)
            xp = _pad_rows(x2d, rows * g).reshape(rows, L)
            out_p = _affine(xp, scale_l, shift_l, tn, x2d.dtype)

        out = out_p.reshape(rows * g, f)[:n]
        return out.reshape(b, -1, f)


# ----------------------------------------------------------------------------
# Pure-JAX references for verification
# ----------------------------------------------------------------------------
def _ref_batch_train(x, mask, gamma, beta):
    f = x.shape[-1]
    r = x.reshape(-1, f).astype(jnp.float32)
    m = mask.reshape(-1) > 0
    cnt = jnp.sum(m.astype(jnp.float32))
    xm = jnp.where(m[:, None], r, 0.0)
    mean = jnp.sum(xm, 0) / cnt
    var = jnp.sum(xm * xm, 0) / cnt - mean * mean
    normed = (r - mean) * lax.rsqrt(var + EPS) * gamma[0] + beta[0]
    out = jnp.where(m[:, None], normed, r)
    return out.reshape(x.shape[0], -1, f)


def _ref_batch_eval(x, running_mean, running_var, gamma, beta):
    f = x.shape[-1]
    r = x.reshape(-1, f).astype(jnp.float32)
    scale = gamma * lax.rsqrt(running_var + EPS)
    shift = beta - running_mean * scale
    return (r * scale + shift).reshape(x.shape[0], -1, f)


def _ref_layer(x, gamma, beta):
    xf = x.astype(jnp.float32)
    mean = jnp.mean(xf, -1, keepdims=True)
    var = jnp.mean((xf - mean) ** 2, -1, keepdims=True)
    return (xf - mean) * lax.rsqrt(var + EPS) * gamma[0] + beta[0]


if __name__ == "__main__":
    B, T, F = 2, 8, 32
    key = jax.random.PRNGKey(0)
    kx, km = jax.random.split(key)
    x = jax.random.normal(kx, (B, T, F), dtype=jnp.float32)
    mask = (jax.random.uniform(km, (B, T)) > 0.3).astype(jnp.float32)
    mask = mask.at[0, 0].set(1.0)   # guarantee at least one masked row

    # batch norm, training mode (masked statistics + masked scatter)
    bn = MaskedNormPallas("batch", F, affine=True, training=True)
    y_bn = jax.block_until_ready(bn(x, mask))
    np.testing.assert_allclose(
        np.asarray(y_bn), np.asarray(_ref_batch_train(x, mask, bn.gamma, bn.beta)),
        rtol=1e-5, atol=1e-5)

    # batch norm, eval mode (running stats, mask ignored, mask-free kernel)
    bn_eval = MaskedNormPallas("batch", F, affine=True, training=False)
    y_ev = jax.block_until_ready(bn_eval(x, mask))
    np.testing.assert_allclose(
        np.asarray(y_ev),
        np.asarray(_ref_batch_eval(x, bn_eval.running_mean, bn_eval.running_var,
                                   bn_eval.gamma, bn_eval.beta)),
        rtol=1e-5, atol=1e-5)

    # layer norm (mask ignored)
    ln = MaskedNormPallas("layer", F, affine=True)
    y_ln = jax.block_until_ready(ln(x, mask))
    np.testing.assert_allclose(
        np.asarray(y_ln), np.asarray(_ref_layer(x, ln.gamma, ln.beta)),
        rtol=1e-5, atol=1e-5)

    # larger case exercising multi-tile pipelining + megacore stats partials
    B2, T2 = 2, 8192
    kx2, km2 = jax.random.split(jax.random.PRNGKey(1))
    x2 = jax.random.normal(kx2, (B2, T2, F), dtype=jnp.float32)
    mask2 = (jax.random.uniform(km2, (B2, T2)) > 0.5).astype(jnp.float32)
    y2 = jax.block_until_ready(bn(x2, mask2))
    np.testing.assert_allclose(
        np.asarray(y2), np.asarray(_ref_batch_train(x2, mask2, bn.gamma, bn.beta)),
        rtol=1e-4, atol=1e-4)

    # bf16 input stays bf16 in HBM end-to-end (halved read/write traffic)
    xb = x2.astype(jnp.bfloat16)
    yb = jax.block_until_ready(bn(xb, mask2))
    assert yb.dtype == jnp.bfloat16
    np.testing.assert_allclose(
        np.asarray(yb).astype(np.float32),
        np.asarray(_ref_batch_train(xb, mask2, bn.gamma, bn.beta)),
        rtol=3e-2, atol=3e-2)

    print("KERNEL_OK")
</pallas_src>

<mosaic_0001>
module attributes {stable_mosaic.version = 11 : i64} {
  func.func @_bn_stats_kernel(%arg0: i32, %arg1: i32, %arg2: memref<8x128xf32, #tpu.memory_space<vmem>>, %arg3: memref<8x4xf32, #tpu.memory_space<vmem>>, %arg4: memref<4x128xf32, #tpu.memory_space<vmem>>, %arg5: memref<8x128xf32, #tpu.memory_space<vmem>>, %arg6: memref<8x128xf32, #tpu.memory_space<vmem>>) attributes {dimension_semantics = [#tpu.dimension_semantics<parallel>, #tpu.dimension_semantics<arbitrary>], iteration_bounds = array<i64: 1, 1>, scalar_prefetch = 0 : i64, scratch_operands = 1 : i64, tpu.core_type = #tpu.core_type<tc>, window_params = [{transform_indices = @transform_0, window_bounds = array<i64: 8, 128>}, {transform_indices = @transform_1, window_bounds = array<i64: 8, 4>}, {pipeline_mode = #tpu.pipeline_mode<synchronous>, transform_indices = @transform_2, window_bounds = array<i64: 4, 128>}, {transform_indices = @transform_3, window_bounds = array<i64: 8, 128>}]} {
    %c0_i32 = arith.constant 0 : i32
    %0 = arith.cmpi eq, %arg1, %c0_i32 : i32
    %1 = arith.extui %0 : i1 to i32
    %c0_i32_0 = arith.constant 0 : i32
    %2 = arith.cmpi ne, %1, %c0_i32_0 : i32
    scf.if %2 {
      %cst_22 = arith.constant 0.000000e+00 : f32
      %34 = vector.broadcast %cst_22 : f32 to vector<8x128xf32>
      %c0_23 = arith.constant 0 : index
      %c0_24 = arith.constant 0 : index
      %35 = vector.load %arg6[%c0_23, %c0_24] : memref<8x128xf32, #tpu.memory_space<vmem>>, vector<8x128xf32>
      tpu.vector_store %arg6[%c0_23, %c0_24], %34 {strides = array<i32>} : memref<8x128xf32, #tpu.memory_space<vmem>>, vector<8x128xf32>,
    } else {
    }
    %c0 = arith.constant 0 : index
    %c0_1 = arith.constant 0 : index
    %3 = vector.load %arg2[%c0, %c0_1] : memref<8x128xf32, #tpu.memory_space<vmem>>, vector<8x128xf32>
    %c0_2 = arith.constant 0 : index
    %c0_3 = arith.constant 0 : index
    %4 = vector.load %arg3[%c0_2, %c0_3] : memref<8x4xf32, #tpu.memory_space<vmem>>, vector<8x4xf32>
    %cst = arith.constant 0.000000e+00 : f32
    %5 = vector.broadcast %cst : f32 to vector<8x4xf32>
    %6 = arith.cmpf ogt, %4, %5 : vector<8x4xf32>
    %7 = arith.extui %6 : vector<8x4xi1> to vector<8x4xi32>
    %8 = arith.sitofp %7 : vector<8x4xi32> to vector<8x4xf32>
    %c0_4 = arith.constant 0 : index
    %c0_5 = arith.constant 0 : index
    %9 = vector.load %arg4[%c0_4, %c0_5] : memref<4x128xf32, #tpu.memory_space<vmem>>, vector<4x128xf32>
    %cst_6 = arith.constant dense<0.000000e+00> : vector<8x128xf32>
    %10 = tpu.matmul %8, %9, %cst_6 {dimension_numbers = #tpu.dot_dimension_numbers<[1], [0], [0], [1], [0, 0, 1, 1], [], []>} : vector<8x4xf32>, vector<4x128xf32>, vector<8x128xf32> -> vector<8x128xf32>
    %11 = arith.mulf %3, %10 : vector<8x128xf32>
    %c0_7 = arith.constant 0 : index
    %c0_8 = arith.constant 0 : index
    %12 = vector.load %arg6[%c0_7, %c0_8] : memref<8x128xf32, #tpu.memory_space<vmem>>, vector<1x128xf32>
    %cst_9 = arith.constant dense<0.000000e+00> : vector<128xf32>
    %13 = vector.multi_reduction <add>, %11, %cst_9 [0] : vector<8x128xf32> to vector<128xf32>
    %14 = vector.shape_cast %13 : vector<128xf32> to vector<1x128xf32>
    %15 = arith.addf %12, %14 : vector<1x128xf32>
    %c0_10 = arith.constant 0 : index
    %c0_11 = arith.constant 0 : index
    %16 = vector.load %arg6[%c0_10, %c0_11] : memref<8x128xf32, #tpu.memory_space<vmem>>, vector<1x128xf32>
    tpu.vector_store %arg6[%c0_10, %c0_11], %15 {strides = array<i32>} : memref<8x128xf32, #tpu.memory_space<vmem>>, vector<1x128xf32>,
    %c1 = arith.constant 1 : index
    %c0_12 = arith.constant 0 : index
    %17 = vector.load %arg6[%c1, %c0_12] : memref<8x128xf32, #tpu.memory_space<vmem>>, vector<1x128xf32>
    %18 = arith.mulf %11, %3 : vector<8x128xf32>
    %cst_13 = arith.constant dense<0.000000e+00> : vector<128xf32>
    %19 = vector.multi_reduction <add>, %18, %cst_13 [0] : vector<8x128xf32> to vector<128xf32>
    %20 = vector.shape_cast %19 : vector<128xf32> to vector<1x128xf32>
    %21 = arith.addf %17, %20 : vector<1x128xf32>
    %c1_14 = arith.constant 1 : index
    %c0_15 = arith.constant 0 : index
    %22 = vector.load %arg6[%c1_14, %c0_15] : memref<8x128xf32, #tpu.memory_space<vmem>>, vector<1x128xf32>
    tpu.vector_store %arg6[%c1_14, %c0_15], %21 {strides = array<i32>} : memref<8x128xf32, #tpu.memory_space<vmem>>, vector<1x128xf32>,
    %c2 = arith.constant 2 : index
    %c0_16 = arith.constant 0 : index
    %23 = vector.load %arg6[%c2, %c0_16] : memref<8x128xf32, #tpu.memory_space<vmem>>, vector<1x128xf32>
    %24 = vector.shape_cast %8 : vector<8x4xf32> to vector<1x8x4xf32>
    %cst_17 = arith.constant dense<0.000000e+00> : vector<1xf32>
    %25 = vector.multi_reduction <add>, %24, %cst_17 [1, 2] : vector<1x8x4xf32> to vector<1xf32>
    %26 = vector.shape_cast %25 : vector<1xf32> to vector<1x1x1xf32>
    %27 = vector.extract %26[0, 0, 0] : f32 from vector<1x1x1xf32>
    %28 = vector.broadcast %27 : f32 to vector<1x128xf32>
    %29 = arith.addf %23, %28 : vector<1x128xf32>
    %c2_18 = arith.constant 2 : index
    %c0_19 = arith.constant 0 : index
    %30 = vector.load %arg6[%c2_18, %c0_19] : memref<8x128xf32, #tpu.memory_space<vmem>>, vector<1x128xf32>
    tpu.vector_store %arg6[%c2_18, %c0_19], %29 {strides = array<i32>} : memref<8x128xf32, #tpu.memory_space<vmem>>, vector<1x128xf32>,
    %c0_i32_20 = arith.constant 0 : i32
    %31 = arith.cmpi eq, %arg1, %c0_i32_20 : i32
    %32 = arith.extui %31 : i1 to i32
    %c0_i32_21 = arith.constant 0 : i32
    %33 = arith.cmpi ne, %32, %c0_i32_21 : i32
    scf.if %33 {
      %c0_22 = arith.constant 0 : index
      %c0_23 = arith.constant 0 : index
      %34 = vector.load %arg6[%c0_22, %c0_23] : memref<8x128xf32, #tpu.memory_space<vmem>>, vector<8x128xf32>
      %c0_24 = arith.constant 0 : index
      %c0_25 = arith.constant 0 : index
      %35 = vector.load %arg5[%c0_24, %c0_25] : memref<8x128xf32, #tpu.memory_space<vmem>>, vector<8x128xf32>
      tpu.vector_store %arg5[%c0_24, %c0_25], %34 {strides = array<i32>} : memref<8x128xf32, #tpu.memory_space<vmem>>, vector<8x128xf32>,
    } else {
    }
    return
  }
  func.func @transform_0(%arg0: i32, %arg1: i32) -> (i32, i32) {
    %c1_i32 = arith.constant 1 : i32
    %0 = arith.muli %arg0, %c1_i32 : i32
    %1 = arith.addi %0, %arg1 : i32
    %c0_i32 = arith.constant 0 : i32
    %c0_i32_0 = arith.constant 0 : i32
    return %1, %c0_i32 : i32, i32
  }
  func.func @transform_1(%arg0: i32, %arg1: i32) -> (i32, i32) {
    %c1_i32 = arith.constant 1 : i32
    %0 = arith.muli %arg0, %c1_i32 : i32
    %1 = arith.addi %0, %arg1 : i32
    %c0_i32 = arith.constant 0 : i32
    %c0_i32_0 = arith.constant 0 : i32
    return %1, %c0_i32 : i32, i32
  }
  func.func @transform_2(%arg0: i32, %arg1: i32) -> (i32, i32) {
    %c0_i32 = arith.constant 0 : i32
    %c0_i32_0 = arith.constant 0 : i32
    %c0_i32_1 = arith.constant 0 : i32
    return %c0_i32, %c0_i32_0 : i32, i32
  }
  func.func @transform_3(%arg0: i32, %arg1: i32) -> (i32, i32) {
    %c0_i32 = arith.constant 0 : i32
    %c0_i32_0 = arith.constant 0 : i32
    return %arg0, %c0_i32 : i32, i32
  }
}

</mosaic_0001>

<llo_original>
// kernel: tpu_custom_call.1
$region0: #{tpu_custom_call.1}
  #allocation0 [shape = 'u32[]', space=smem, size = 0x4, offset = 0x4, fixed_abs, tag = 'smem constant byte address 0x4 - core index']
  #allocation1 [shape = 'u32[144,128]{1,0:T(1,128)}', space=vmem, size = 0x12000, scoped, tag = 'internal scratch']
  #allocation2 [shape = 'f32[8,128]{1,0:T(8,128)}', space=vmem, size = 0x1000, scoped, tag = 'scratch operand']
  %s0 = inlined_call_operand.vmem [shape: f32[8,128], index: 0, kind: input, shape index: {}]
  %s1 = inlined_call_operand.vmem [shape: f32[8,4], index: 1, kind: input, shape index: {}]
  %s2 = inlined_call_operand.vmem [shape: f32[4,128], index: 2, kind: input, shape index: {}]
  %s3 = inlined_call_operand.hbm [shape: f32[8,128], index: 3, kind: output, shape index: {}]
  %s4 = sld [smem:[#allocation0]]
  $region30: #{tpu_custom_call.1} parent=0
    _
  %s6 = ssub.s32 1, %s4
  %s7 = scalar_select 0, %s6, %s4
  $region1: #{tpu_custom_call.1} parent=0
    #allocation3 [shape = 'u8[4096]{0}', space=vmem, size = 0x1000, scoped, tag = 'output window, operand 0, single buffered']
    #allocation4 [shape = 's32[1]{0}', space=sflag, size = 0x4, scoped, tag = 'scoped memory for tpu_custom_call.1']
    %8 = vsyncpa [#allocation4], 0
    // Predicated region
    $region2: #{tpu_custom_call.1} parent=1 // pred_check
      _
    $region3: #{tpu_custom_call.1} parent=1 // pred_check_branch
      %10 = sbr.rel (0) target = $region5
    $region4: #{tpu_custom_call.1} parent=1 // pred_region
      %s11 = sadd.s32 0, 0
      %p12 = scmp.lt.s32.totalorder %s11, 0
      %s13 = scalar_select %p12, %s11, 0
      %s14 = smul.addr %s13, 8
      %s15 = scalar_lea.vmem %s0, %s14
      %s16 = sadd.s32 0, 0
    $region5: #{tpu_custom_call.1} parent=1 // pred_fallthru
      _
    // Predicated region
    $region6: #{tpu_custom_call.1} parent=1 // pred_check
      _
    $region7: #{tpu_custom_call.1} parent=1 // pred_check_branch
      %18 = sbr.rel (0) target = $region9
    $region8: #{tpu_custom_call.1} parent=1 // pred_region
      %s19 = sadd.s32 0, 0
      %p20 = scmp.lt.s32.totalorder %s19, 0
      %s21 = scalar_select %p20, %s19, 0
      %s22 = smul.addr %s21, 8
      %s23 = scalar_lea.vmem %s1, %s22
      %s24 = sadd.s32 0, 0
    $region9: #{tpu_custom_call.1} parent=1 // pred_fallthru
      _
    // Predicated region
    $region10: #{tpu_custom_call.1} parent=1 // pred_check
      _
    $region11: #{tpu_custom_call.1} parent=1 // pred_check_branch
      %26 = sbr.rel (0) target = $region13
    $region12: #{tpu_custom_call.1} parent=1 // pred_region
      _
    $region13: #{tpu_custom_call.1} parent=1 // pred_fallthru
      _
    %s27 = sadd.s32 0, 0
    %p28 = scmp.lt.s32.totalorder %s27, 0
    %s29 = scalar_select %p28, %s27, 0
    %s30 = smul.addr %s29, 8
    %s31 = scalar_lea.vmem %s0, %s30
    %s32 = sadd.s32 0, 0
    %p33 = scmp.lt.s32.totalorder %s32, 0
    %s34 = scalar_select %p33, %s32, 0
    %s35 = smul.addr %s34, 8
    %s36 = scalar_lea.vmem %s1, %s35
    %s37 = sadd.s32 0, 0
    %p38 = scmp.lt.s32.totalorder %s37, 0
    %s39 = scalar_select %p38, %s37, 0
    %s40 = smul.addr %s39, 8
    %s41 = scalar_lea.vmem %s0, %s40
    %s42 = sadd.s32 0, 0
    %s43 = sadd.s32 0, 0
    %p44 = scmp.lt.s32.totalorder %s43, 0
    %s45 = scalar_select %p44, %s43, 0
    %s46 = smul.addr %s45, 8
    %s47 = scalar_lea.vmem %s1, %s46
    %s48 = sadd.s32 0, 0
    %p49 = scmp.eq.s32.totalorder 0, 0
    // Predicated region
    $region14: #{tpu_custom_call.1} parent=1 // pred_check
      %p50 = pneg %p49
    $region15: #{tpu_custom_call.1} parent=1 // pred_check_branch
      %52 = sbr.rel (%p50) target = $region17
    $region16: #{tpu_custom_call.1} parent=1 // pred_region
      %53 = vst [vmem:[#allocation2] sm:$0xff] 0.0
    $region17: #{tpu_custom_call.1} parent=1 // pred_fallthru
      _
    %v54 = vld [vmem:[%s41] sm:$0xff]
    %v55 = vld [vmem:[%s47] sm:$0xff]
    %vm56 = vcmp.gt.f32.partialorder %v55, 0.0
    %v57 = vsel %vm56, 1, 0
    %v58 = vcvt.s32.f32 %v57
    %v59 = vld [vmem:[%s2] sm:$0xf]
    %vm60 = vcmask 31744
    %v62 = vsel %vm60, %v58, 0
    %vm64 = vcmask 1043456
    %v66 = vsel %vm64, %v59, 0
    %68 = vmatprep.subr.mxu0 0.0
    %69 = vmatpush1.msra.mxu0 %v66
    %70 = vmatprep.subr.mxu0 0.0
    %71 = vmatpush1.msra.mxu0 0.0
    %72 = vmatprep.subr.mxu0 0.0
    %73 = vmatpush1.msra.mxu0 0.0
    %74 = vmatprep.subr.mxu0 0.0
    %75 = vmatpush1.msra.mxu0 0.0
    %76 = vmatprep.subr.mxu0 0.0
    %77 = vmatpush1.msra.mxu0 0.0
    %78 = vmatprep.subr.mxu0 0.0
    %79 = vmatpush1.msra.mxu0 0.0
    %80 = vmatprep.subr.mxu0 0.0
    %81 = vmatpush1.msra.mxu0 0.0
    %82 = vmatprep.subr.mxu0 0.0
    %83 = vmatpush1.msra.mxu0 0.0
    %84 = vmatprep.subr.mxu0 0.0
    %85 = vmatpush1.msra.mxu0 0.0
    %86 = vmatprep.subr.mxu0 0.0
    %87 = vmatpush1.msra.mxu0 0.0
    %88 = vmatprep.subr.mxu0 0.0
    %89 = vmatpush1.msra.mxu0 0.0
    %90 = vmatprep.subr.mxu0 0.0
    %91 = vmatpush1.msra.mxu0 0.0
    %92 = vmatprep.subr.mxu0 0.0
    %93 = vmatpush1.msra.mxu0 0.0
    %94 = vmatprep.subr.mxu0 0.0
    %95 = vmatpush1.msra.mxu0 0.0
    %96 = vmatprep.subr.mxu0 0.0
    %97 = vmatpush1.msra.mxu0 0.0
    %98 = vmatprep.subr.mxu0 0.0
    %99 = vmatpush1.msra.mxu0 0.0
    %100 = vmatprep.subr.mxu0 0.0
    %101 = vmatpush1.msra.mxu0 0.0
    %102 = vmatprep.subr.mxu0 0.0
    %103 = vmatpush1.msra.mxu0 0.0
    %104 = vmatprep.subr.mxu0 0.0
    %105 = vmatpush1.msra.mxu0 0.0
    %106 = vmatprep.subr.mxu0 0.0
    %107 = vmatpush1.msra.mxu0 0.0
    %108 = vmatprep.subr.mxu0 0.0
    %109 = vmatpush1.msra.mxu0 0.0
    %110 = vmatprep.subr.mxu0 0.0
    %111 = vmatpush1.msra.mxu0 0.0
    %112 = vmatprep.subr.mxu0 0.0
    %113 = vmatpush1.msra.mxu0 0.0
    %114 = vmatprep.subr.mxu0 0.0
    %115 = vmatpush1.msra.mxu0 0.0
    %116 = vmatprep.subr.mxu0 0.0
    %117 = vmatpush1.msra.mxu0 0.0
    %118 = vmatprep.subr.mxu0 0.0
    %119 = vmatpush1.msra.mxu0 0.0
    %120 = vmatprep.subr.mxu0 0.0
    %121 = vmatpush1.msra.mxu0 0.0
    %122 = vmatprep.subr.mxu0 0.0
    %123 = vmatpush1.msra.mxu0 0.0
    %124 = vmatprep.subr.mxu0 0.0
    %125 = vmatpush1.msra.mxu0 0.0
    %126 = vmatprep.subr.mxu0 0.0
    %127 = vmatpush1.msra.mxu0 0.0
    %128 = vmatprep.subr.mxu0 0.0
    %129 = vmatpush1.msra.mxu0 0.0
    %130 = vmatprep.subr.mxu0 0.0
    %131 = vmatpush1.msra.mxu0 0.0
    %132 = vmatprep.mubr.f32.mxu0 0.0
    %133 = vmatmul.mubr.f32.gmra.mrb[0].mxu0 %v62
    %v134 = vpop.f32.mrb[0].mxu0
    %v135 = vadd.f32 0.0, %v134
    %v136 = vpop.f32.mrb[0].mxu0
    %137 = vdwg.mxu0
    %v138 = vmul.f32 %v54, %v135
    %v139 = vld [vmem:[#allocation2] sm:$0x1]
    %v140 = vrot.slane %v138, 4
    %v141 = vadd.f32 %v138, %v140
    %v142 = vrot.slane %v141, 2
    %v143 = vadd.f32 %v141, %v142
    %v144 = vrot.slane %v143, 1
    %v145 = vadd.f32 %v143, %v144
    %v146 = vadd.f32 %v139, %v145
    %147 = vst [vmem:[#allocation2] sm:$0x1] %v146
    %v148 = vld [vmem:[#allocation2 + $0x1] sm:$0x1]
    %v149 = vmul.f32 %v138, %v54
    %v150 = vrot.slane %v149, 4
    %v151 = vadd.f32 %v149, %v150
    %v152 = vrot.slane %v151, 2
    %v153 = vadd.f32 %v151, %v152
    %v154 = vrot.slane %v153, 1
    %v155 = vadd.f32 %v153, %v154
    %v156 = vadd.f32 %v148, %v155
    %157 = vst [vmem:[#allocation2 + $0x1] sm:$0x1] %v156
    %v158 = vld [vmem:[#allocation2 + $0x2] sm:$0x1]
    %v159 = vsel %vm60, %v58, 0.0
    %160 = vadd.xlane.f32.xlu0 %v159
    %v161 = vpop.xlane.xlu0 %160
    %v162 = vrot.slane %v161, 4
    %v163 = vadd.f32 %v161, %v162
    %v164 = vrot.slane %v163, 2
    %v165 = vadd.f32 %v163, %v164
    %v166 = vrot.slane %v165, 1
    %v167 = vadd.f32 %v165, %v166
    %s168 = vtos %v167
    %v169 = vstv %s168
    %v170 = vadd.f32 %v158, %v169
    %171 = vst [vmem:[#allocation2 + $0x2] sm:$0x1] %v170
    // Predicated region
    $region18: #{tpu_custom_call.1} parent=1 // pred_check
      %p172 = pneg %p49
    $region19: #{tpu_custom_call.1} parent=1 // pred_check_branch
      %174 = sbr.rel (%p172) target = $region21
    $region20: #{tpu_custom_call.1} parent=1 // pred_region
      %v175 = vld [vmem:[#allocation2] sm:$0xff]
      %176 = vst [vmem:[#allocation3] sm:$0xff] %v175
    $region21: #{tpu_custom_call.1} parent=1 // pred_fallthru
      _
    // Predicated region
    $region22: #{tpu_custom_call.1} parent=1 // pred_check
      _
    $region23: #{tpu_custom_call.1} parent=1 // pred_check_branch
      %178 = sbr.rel (0) target = $region25
    $region24: #{tpu_custom_call.1} parent=1 // pred_region
      %s180 = ssub.s32 128, 128
      %181 = vsyncadd [#allocation4], %s180
      %s183 = sshll.u32 [#allocation3], 4
      %s184 = int_to_ptr.vmem [resolvable:$true] %s183
      %186 = dma.vmem_to_hbm [thread:$0]  %s184, 128, %s3, [#allocation4]
    $region25: #{tpu_custom_call.1} parent=1 // pred_fallthru
      _
    // Predicated region
    $region26: #{tpu_custom_call.1} parent=1 // pred_check
      _
    $region27: #{tpu_custom_call.1} parent=1 // pred_check_branch
      %188 = sbr.rel (0) target = $region29
    $region28: #{tpu_custom_call.1} parent=1 // pred_region
      %189 = dma.done [#allocation4], 128
    $region29: #{tpu_custom_call.1} parent=1 // pred_fallthru
      _
    %190 = vsyncpa [#allocation4], 1

</llo_original>
